<compile_context>
chip_gen: v7x
topology: tpu7x:2x2x1
jax: 0.10.0
libtpu: 0.0.40
codegen_flags: <defaults>
</compile_context>

<pallas_src>
import functools
import numpy as np
import jax
import jax.numpy as jnp
from jax.experimental import pallas as pl
from jax.experimental.pallas import tpu as pltpu

# ----------------------------- configuration ---------------------------------
N_CLASS = 21
STEM = 16                     # real ResNet-101 stem width = 64 (reduced width; keeps the
                              # heavy layers lane-dense: layer3/4 & PPM channels >= 128)
BLOCKS = (1, 1, 2, 1)         # real ResNet-101: (3, 4, 23, 3)   (reduced depth)
EXPANSION = 4
PPM_SIZES = (6, 3, 2, 1)
BN_EPS = 1e-5
VMEM_LIMIT = 48 * 1024 * 1024   # headroom for double-buffered tiles; safe on v5e/v6e/v7x


def _round_up(x, m):
    return (x + m - 1) // m * m


def _row_tile(M, tm):
    """Pick a row tile: big (mem-bound sweet spot) but leaving >=2 grid steps when possible."""
    if M >= 256:
        return min(tm, _round_up(pl.cdiv(M, 2), 8))
    return _round_up(M, 8)


# ----------------------- Pallas kernel 1: fused matmul -----------------------
def _matmul_kernel(x_ref, w_ref, s_ref, b_ref, o_ref, *, relu):
    acc = jnp.dot(x_ref[...], w_ref[...], preferred_element_type=jnp.float32)
    y = acc * s_ref[...] + b_ref[...]
    if relu:
        y = jnp.maximum(y, 0.0)
    o_ref[...] = y.astype(o_ref.dtype)


def matmul_scale_shift(x, w, scale=None, shift=None, relu=False,
                       out_dtype=jnp.bfloat16, tm=512):
    """(M,K) @ (K,N) in bf16 on the MXU, then per-column f32 scale/shift (+ ReLU)."""
    M, K = x.shape
    K2, N = w.shape
    assert K == K2
    if scale is None:
        scale = jnp.ones((N,), jnp.float32)
    if shift is None:
        shift = jnp.zeros((N,), jnp.float32)
    scale = scale.reshape(1, N).astype(jnp.float32)
    shift = shift.reshape(1, N).astype(jnp.float32)

    tm_eff = _row_tile(M, tm)
    grid = (pl.cdiv(M, tm_eff),)          # ragged last block handled by Pallas (no pad copy)

    return pl.pallas_call(
        functools.partial(_matmul_kernel, relu=relu),
        out_shape=jax.ShapeDtypeStruct((M, N), out_dtype),
        grid_spec=pltpu.PrefetchScalarGridSpec(
            num_scalar_prefetch=0,
            grid=grid,
            in_specs=[
                pl.BlockSpec((tm_eff, K), lambda i: (i, 0)),
                pl.BlockSpec((K, N), lambda i: (0, 0)),     # weight resident across steps
                pl.BlockSpec((1, N), lambda i: (0, 0)),
                pl.BlockSpec((1, N), lambda i: (0, 0)),
            ],
            out_specs=pl.BlockSpec((tm_eff, N), lambda i: (i, 0)),
        ),
        compiler_params=pltpu.CompilerParams(
            dimension_semantics=("parallel",),
            vmem_limit_bytes=VMEM_LIMIT),
    )(x.astype(jnp.bfloat16), w.astype(jnp.bfloat16), scale, shift)


# ------------- Pallas kernel 2: tap-accumulated 3x3 stride-1 conv -------------
# For stride-1, padding==dilation 3x3 convs, output (ho,wo) flattened on the padded-width
# grid (rout = ho*Wp + wo) needs, for tap (i,j), the input flat row rout + d*(i*Wp + j):
# a constant per-tap shift.  Each tap slice is DMA'd directly from HBM (no im2col blow-up),
# double-buffered, and accumulated in f32; the BN/bias/ReLU epilogue runs once per tile.
def _conv_tap_kernel(x_hbm, w_ref, s_ref, b_ref, o_ref, xbuf, sem,
                     *, offsets, tm, nb, relu):
    idx = pl.program_id(0)
    if nb == 1:
        n = idx
        row0 = 0
    else:
        n = idx // nb
        row0 = (idx % nb) * tm
    ntap = len(offsets)

    def start(t, slot):
        pltpu.make_async_copy(
            x_hbm.at[n, pl.ds(row0 + offsets[t], tm), :],
            xbuf.at[slot], sem.at[slot]).start()

    start(0, 0)
    acc = jnp.zeros(o_ref.shape, jnp.float32)
    for t in range(ntap):                      # static unrolled loop over the 9 taps
        slot = t & 1
        pltpu.make_async_copy(
            x_hbm.at[n, pl.ds(row0 + offsets[t], tm), :],
            xbuf.at[slot], sem.at[slot]).wait()
        if t + 1 < ntap:
            start(t + 1, 1 - slot)             # prefetch next tap while this one computes
        acc = acc + jnp.dot(xbuf[slot], w_ref[t],
                            preferred_element_type=jnp.float32)
    y = acc * s_ref[...] + b_ref[...]
    if relu:
        y = jnp.maximum(y, 0.0)
    o_ref[...] = y.astype(o_ref.dtype)


def conv3x3_s1(x, w, bias=None, bn=None, dilation=1, relu=False,
               out_dtype=jnp.bfloat16, tm=512):
    N, H, W_, Cin = x.shape
    kh, kw, _, Cout = w.shape
    assert (kh, kw) == (3, 3)
    d = dilation
    Wp = W_ + 2 * d
    M_im = H * Wp                              # outputs embedded on the padded-width grid
    tm_eff = min(tm, _round_up(M_im, 8))
    nb = pl.cdiv(M_im, tm_eff)
    M_pad = nb * tm_eff
    max_off = d * (2 * Wp + 2)

    # single spatial pad (zeros) with enough extra bottom rows to cover the last block's taps
    rows_needed = M_pad + max_off
    rows_have = (H + 2 * d) * Wp
    diff = rows_needed - rows_have
    extra_h = 0 if diff <= 0 else -(-diff // Wp)
    xp = jnp.pad(x.astype(jnp.bfloat16),
                 ((0, 0), (d, d + extra_h), (d, d), (0, 0)))
    x_flat = xp.reshape(N, (H + 2 * d + extra_h) * Wp, Cin)

    # TODO(synk): for very wide real layers (e.g. pred1 with Cin=4096) the (9,Cin,Cout)
    # weight block should be K-tiled / per-tap DMA'd on v7x's 64 MiB VMEM.
    w9 = w.reshape(9, Cin, Cout).astype(jnp.bfloat16)
    scale, shift = _fold_bn(bias, bn, Cout)
    offsets = tuple(d * (i * Wp + j) for i in range(3) for j in range(3))

    out = pl.pallas_call(
        functools.partial(_conv_tap_kernel, offsets=offsets, tm=tm_eff, nb=nb,
                          relu=relu),
        out_shape=jax.ShapeDtypeStruct((N * M_pad, Cout), out_dtype),
        grid_spec=pltpu.PrefetchScalarGridSpec(
            num_scalar_prefetch=0,
            grid=(N * nb,),
            in_specs=[
                pl.BlockSpec(memory_space=pl.ANY),              # padded input, raw HBM
                pl.BlockSpec((9, Cin, Cout), lambda i: (0, 0, 0)),
                pl.BlockSpec((1, Cout), lambda i: (0, 0)),
                pl.BlockSpec((1, Cout), lambda i: (0, 0)),
            ],
            out_specs=pl.BlockSpec((tm_eff, Cout), lambda i: (i, 0)),
            scratch_shapes=[
                pltpu.VMEM((2, tm_eff, Cin), jnp.bfloat16),     # tap double buffer
                pltpu.SemaphoreType.DMA((2,)),
            ],
        ),
        compiler_params=pltpu.CompilerParams(
            dimension_semantics=("parallel",),
            vmem_limit_bytes=VMEM_LIMIT),
    )(x_flat, w9,
      scale.reshape(1, Cout).astype(jnp.float32),
      shift.reshape(1, Cout).astype(jnp.float32))

    out = out.reshape(N, M_pad, Cout)[:, :M_im, :]
    return out.reshape(N, H, Wp, Cout)[:, :, :W_, :]


# ------------------- Pallas kernel 3: residual add + ReLU ---------------------
def _add_relu_kernel(a_ref, b_ref, o_ref):
    o_ref[...] = jnp.maximum(a_ref[...] + b_ref[...], 0).astype(o_ref.dtype)


def add_relu(a, b, tm=1024):
    M, C = a.shape
    tm_eff = _row_tile(M, tm)
    grid = (pl.cdiv(M, tm_eff),)
    return pl.pallas_call(
        _add_relu_kernel,
        out_shape=jax.ShapeDtypeStruct((M, C), a.dtype),
        grid_spec=pltpu.PrefetchScalarGridSpec(
            num_scalar_prefetch=0, grid=grid,
            in_specs=[pl.BlockSpec((tm_eff, C), lambda i: (i, 0)),
                      pl.BlockSpec((tm_eff, C), lambda i: (i, 0))],
            out_specs=pl.BlockSpec((tm_eff, C), lambda i: (i, 0))),
        compiler_params=pltpu.CompilerParams(dimension_semantics=("parallel",)),
    )(a, b)


# ------------ Pallas kernel 4: batched left-matmul (resampling) ---------------
def _bmatmul_kernel(a_ref, x_ref, o_ref):
    y = jnp.dot(a_ref[...], x_ref[0], preferred_element_type=jnp.float32)
    o_ref[...] = y[None].astype(o_ref.dtype)


def batched_left_matmul(A, x, out_dtype=jnp.float32):
    """out[b] = A @ x[b]   with x: (B, K, C), A: (Mo, K)  -> (B, Mo, C)."""
    B, K, C = x.shape
    Mo = A.shape[0]
    return pl.pallas_call(
        _bmatmul_kernel,
        out_shape=jax.ShapeDtypeStruct((B, Mo, C), out_dtype),
        grid_spec=pltpu.PrefetchScalarGridSpec(
            num_scalar_prefetch=0, grid=(B,),
            in_specs=[pl.BlockSpec((Mo, K), lambda b: (0, 0)),
                      pl.BlockSpec((1, K, C), lambda b: (b, 0, 0))],
            out_specs=pl.BlockSpec((1, Mo, C), lambda b: (b, 0, 0))),
        compiler_params=pltpu.CompilerParams(dimension_semantics=("parallel",)),
    )(A.astype(jnp.bfloat16), x.astype(jnp.bfloat16))


# ------ Pallas kernel 5: fused PPM branch (1x1 conv + BN + ReLU + upsample) ----
def _ppm_branch_kernel(pool_ref, w_ref, s_ref, b_ref, u_ref, o_ref):
    t = jnp.dot(pool_ref[0].astype(jnp.bfloat16), w_ref[...],
                preferred_element_type=jnp.float32)
    t = jnp.maximum(t * s_ref[...] + b_ref[...], 0.0)
    y = jnp.dot(u_ref[...], t.astype(jnp.bfloat16),
                preferred_element_type=jnp.float32)
    o_ref[...] = y[None].astype(o_ref.dtype)


def ppm_branch(pool, w, scale, shift, U, out_dtype=jnp.bfloat16):
    """pool: (N, s*s, Cin) pooled bins; w: (Cin, Cout); U: (H*W, s*s) bilinear upsample."""
    N, S2, Cin = pool.shape
    Cout = w.shape[-1]
    HW = U.shape[0]
    return pl.pallas_call(
        _ppm_branch_kernel,
        out_shape=jax.ShapeDtypeStruct((N, HW, Cout), out_dtype),
        grid_spec=pltpu.PrefetchScalarGridSpec(
            num_scalar_prefetch=0, grid=(N,),
            in_specs=[
                pl.BlockSpec((1, S2, Cin), lambda b: (b, 0, 0)),
                pl.BlockSpec((Cin, Cout), lambda b: (0, 0)),
                pl.BlockSpec((1, Cout), lambda b: (0, 0)),
                pl.BlockSpec((1, Cout), lambda b: (0, 0)),
                pl.BlockSpec((HW, S2), lambda b: (0, 0)),
            ],
            out_specs=pl.BlockSpec((1, HW, Cout), lambda b: (b, 0, 0))),
        compiler_params=pltpu.CompilerParams(dimension_semantics=("parallel",)),
    )(pool, w.astype(jnp.bfloat16),
      scale.reshape(1, Cout).astype(jnp.float32),
      shift.reshape(1, Cout).astype(jnp.float32),
      U.astype(jnp.bfloat16))


# ------------------------------ maxpool (stem) --------------------------------
def maxpool_3x3_s2_p1(x):
    """MaxPool2d(3, stride=2, padding=1) on NHWC: fused plain-JAX 9-way maximum
    (per review: avoids the 9x stacked-window HBM blow-up; XLA fuses this to one pass)."""
    N, H, W, C = x.shape
    Ho = (H + 2 - 3) // 2 + 1
    Wo = (W + 2 - 3) // 2 + 1
    xp = jnp.pad(x, ((0, 0), (1, 1), (1, 1), (0, 0)), constant_values=-jnp.inf)
    out = None
    for dy in range(3):
        for dx in range(3):
            win = xp[:, dy:dy + 2 * (Ho - 1) + 1:2, dx:dx + 2 * (Wo - 1) + 1:2, :]
            out = win if out is None else jnp.maximum(out, win)
    return out


# --------------------------- conv / BN plumbing -------------------------------
def _fold_bn(bias, bn, cout):
    """Fold eval-mode BatchNorm (+ conv bias) into per-channel f32 scale/shift."""
    b = bias if bias is not None else jnp.zeros((cout,), jnp.float32)
    if bn is None:
        return jnp.ones((cout,), jnp.float32), b.astype(jnp.float32)
    gamma, beta, mean, var = bn
    scale = gamma / jnp.sqrt(var + BN_EPS)
    shift = beta + (b - mean) * scale
    return scale, shift


def _im2col(x, kh, kw, stride, padding, dilation):
    N, H, W, C = x.shape
    xp = jnp.pad(x, ((0, 0), (padding, padding), (padding, padding), (0, 0)))
    Ho = (H + 2 * padding - dilation * (kh - 1) - 1) // stride + 1
    Wo = (W + 2 * padding - dilation * (kw - 1) - 1) // stride + 1
    cols = []
    for i in range(kh):
        for j in range(kw):
            cols.append(xp[:, i * dilation:i * dilation + stride * (Ho - 1) + 1:stride,
                              j * dilation:j * dilation + stride * (Wo - 1) + 1:stride, :])
    patches = jnp.concatenate(cols, axis=-1)
    return patches, Ho, Wo


def conv2d(x, w, bias=None, bn=None, stride=1, padding=0, dilation=1, relu=False,
           out_dtype=jnp.bfloat16):
    """x: NHWC, w: HWIO.  Fused conv + BN(eval) + optional ReLU via Pallas."""
    N, H, W_, Cin = x.shape
    kh, kw, _, Cout = w.shape
    if kh == 3 and kw == 3 and stride == 1 and padding == dilation:
        return conv3x3_s1(x, w, bias=bias, bn=bn, dilation=dilation, relu=relu,
                          out_dtype=out_dtype)
    # TODO(synk): the single stride-2 3x3 conv (layer2 block0) and the 7x7 stem still use
    # im2col; a strided-DMA (pl.ds stride) variant of the tap kernel would remove those too.
    if kh == 1 and kw == 1 and stride == 1 and padding == 0:
        patches, Ho, Wo = x, H, W_
    else:
        patches, Ho, Wo = _im2col(x, kh, kw, stride, padding, dilation)
    xm = patches.reshape(N * Ho * Wo, kh * kw * Cin)
    wm = w.reshape(kh * kw * Cin, Cout)
    scale, shift = _fold_bn(bias, bn, Cout)
    y = matmul_scale_shift(xm, wm, scale, shift, relu=relu, out_dtype=out_dtype)
    return y.reshape(N, Ho, Wo, Cout)


# ------------- separable spatial resampling (adaptive pool / bilinear) --------
def adaptive_avg_matrix(in_size, out_size):
    A = np.zeros((out_size, in_size), np.float32)
    for i in range(out_size):
        s = (i * in_size) // out_size
        e = -(-((i + 1) * in_size) // out_size)   # ceil
        A[i, s:e] = 1.0 / (e - s)
    return A


def bilinear_matrix(in_size, out_size, align_corners=True):
    # align_corners=True matches the original PSPNet-era F.upsample(mode='bilinear').
    A = np.zeros((out_size, in_size), np.float32)
    for o in range(out_size):
        if align_corners and out_size > 1:
            src = o * (in_size - 1) / (out_size - 1)
        else:
            src = (o + 0.5) * in_size / out_size - 0.5
        src = min(max(src, 0.0), in_size - 1)
        i0 = int(np.floor(src))
        i1 = min(i0 + 1, in_size - 1)
        f = src - i0
        A[o, i0] += 1.0 - f
        A[o, i1] += f
    return A


def bilinear_upsample(x, out_h, out_w, out_dtype=jnp.float32):
    """NHWC bilinear upsample as two batched left-matmuls (no moveaxis transposes)."""
    N, H, W, C = x.shape
    Bw = jnp.asarray(bilinear_matrix(W, out_w))
    Bh = jnp.asarray(bilinear_matrix(H, out_h))
    y = batched_left_matmul(Bw, x.reshape(N * H, W, C), out_dtype=jnp.bfloat16)
    y = y.reshape(N, H, out_w * C)
    y = batched_left_matmul(Bh, y, out_dtype=out_dtype)
    return y.reshape(N, out_h, out_w, C)


# ------------------------------ parameter init --------------------------------
def _he(key, shape):
    fan_in = int(np.prod(shape[:-1]))
    return jax.random.normal(key, shape, jnp.float32) * np.sqrt(2.0 / fan_in)


def _bn_params(key, c):
    k1, k2, k3, k4 = jax.random.split(key, 4)
    gamma = 1.0 + 0.1 * jax.random.normal(k1, (c,), jnp.float32)
    beta = 0.1 * jax.random.normal(k2, (c,), jnp.float32)
    mean = 0.1 * jax.random.normal(k3, (c,), jnp.float32)
    var = 1.0 + 0.1 * jax.random.uniform(k4, (c,), jnp.float32)
    return (gamma, beta, mean, var)


def init_params(key):
    # NOTE: the pretrained torchvision ResNet-101 cannot be loaded here; the same
    # bottleneck topology (incl. PSPNet dilation/stride surgery) is reproduced with
    # deterministic synthetic weights at reduced width/depth.
    keys = iter(jax.random.split(key, 512))
    nk = lambda: next(keys)
    params = {}
    params['stem_w'] = _he(nk(), (7, 7, 3, STEM))
    params['stem_bn'] = _bn_params(nk(), STEM)

    inplanes = STEM
    layer_specs = [(STEM,     BLOCKS[0], 1, 1),
                   (2 * STEM, BLOCKS[1], 2, 1),
                   (4 * STEM, BLOCKS[2], 1, 2),   # layer3 surgery: dil 2, stride 1
                   (8 * STEM, BLOCKS[3], 1, 4)]   # layer4 surgery: dil 4, stride 1
    layers = []
    for planes, nblocks, stride, dilation in layer_specs:
        blocks = []
        for b in range(nblocks):
            s = stride if b == 0 else 1
            p = {'stride': s, 'dilation': dilation}
            p['conv1_w'] = _he(nk(), (1, 1, inplanes, planes))
            p['bn1'] = _bn_params(nk(), planes)
            p['conv2_w'] = _he(nk(), (3, 3, planes, planes))
            p['bn2'] = _bn_params(nk(), planes)
            p['conv3_w'] = _he(nk(), (1, 1, planes, planes * EXPANSION))
            p['bn3'] = _bn_params(nk(), planes * EXPANSION)
            if b == 0 and (s != 1 or inplanes != planes * EXPANSION):
                p['down_w'] = _he(nk(), (1, 1, inplanes, planes * EXPANSION))
                p['down_bn'] = _bn_params(nk(), planes * EXPANSION)
            blocks.append(p)
            inplanes = planes * EXPANSION
        layers.append(blocks)
    params['layers'] = layers

    ppm_in, ppm_out = inplanes, 8 * STEM
    params['ppm'] = []
    for _ in PPM_SIZES:
        params['ppm'].append({
            'conv_w': _he(nk(), (1, 1, ppm_in, ppm_out)),
            'conv_b': 0.01 * jax.random.normal(nk(), (ppm_out,), jnp.float32),
            'bn': _bn_params(nk(), ppm_out),
        })

    cat_c = ppm_in + len(PPM_SIZES) * ppm_out
    pred_mid = 8 * STEM
    params['pred1_w'] = _he(nk(), (3, 3, cat_c, pred_mid))
    params['pred1_b'] = 0.01 * jax.random.normal(nk(), (pred_mid,), jnp.float32)
    params['pred_bn'] = _bn_params(nk(), pred_mid)
    params['pred2_w'] = _he(nk(), (1, 1, pred_mid, N_CLASS))
    params['pred2_b'] = 0.01 * jax.random.normal(nk(), (N_CLASS,), jnp.float32)
    # TODO(synk): auxiliary head (1x1 conv on base3 output) runs only in training mode;
    #             this script reproduces the eval-mode forward path only.
    return params


# ------------------------------- forward pass ---------------------------------
def bottleneck(x, p):
    d, s = p['dilation'], p['stride']
    identity = x
    out = conv2d(x, p['conv1_w'], bn=p['bn1'], relu=True)
    out = conv2d(out, p['conv2_w'], bn=p['bn2'],
                 stride=s, padding=d, dilation=d, relu=True)
    out = conv2d(out, p['conv3_w'], bn=p['bn3'], relu=False)
    if 'down_w' in p:
        identity = conv2d(x, p['down_w'], bn=p['down_bn'], stride=s, relu=False)
    N, H, W_, C = out.shape
    y = add_relu(out.reshape(-1, C), identity.reshape(-1, C))
    return y.reshape(N, H, W_, C)


def pyramid_pooling(x, ppm_params):
    N, H, W, C = x.shape
    HW = H * W
    x_flat = x.reshape(N, HW, C)

    # One pooling matmul for ALL pyramid scales: the backbone feature is read once.
    P_rows, row_off = [], [0]
    for s in PPM_SIZES:
        P_rows.append(np.kron(adaptive_avg_matrix(H, s), adaptive_avg_matrix(W, s)))
        row_off.append(row_off[-1] + s * s)
    P_all = jnp.asarray(np.concatenate(P_rows, axis=0))           # (sum s^2, H*W)
    pooled = batched_left_matmul(P_all, x_flat, out_dtype=jnp.float32)   # (N, sum s^2, C)

    feats = [x]
    for idx, (s, q) in enumerate(zip(PPM_SIZES, ppm_params)):
        pool_s = pooled[:, row_off[idx]:row_off[idx + 1], :]      # (N, s*s, C)
        U = jnp.asarray(np.kron(bilinear_matrix(s, H), bilinear_matrix(s, W)))  # (H*W, s*s)
        Cout = q['conv_w'].shape[-1]
        scale, shift = _fold_bn(q['conv_b'], q['bn'], Cout)
        branch = ppm_branch(pool_s, q['conv_w'][0, 0], scale, shift, U)          # (N, HW, Cout)
        feats.append(branch.reshape(N, H, W, Cout))
    return jnp.concatenate(feats, axis=-1)


def pspnet_forward(params, x_nchw):
    x = jnp.transpose(x_nchw, (0, 2, 3, 1)).astype(jnp.bfloat16)   # NCHW -> NHWC
    orig_h, orig_w = x.shape[1], x.shape[2]

    # base0 (conv1 7x7/s2 + bn + relu + maxpool)
    x = conv2d(x, params['stem_w'], bn=params['stem_bn'],
               stride=2, padding=3, relu=True)
    x = maxpool_3x3_s2_p1(x)

    # base1 .. base4
    for blocks in params['layers']:
        for p in blocks:
            x = bottleneck(x, p)

    # Pyramid Pooling Module (fused pool + conv/BN/ReLU + upsample per branch)
    x = pyramid_pooling(x, params['ppm'])

    # prediction layer: 3x3 conv + BN + ReLU, then 1x1 conv to classes
    x = conv2d(x, params['pred1_w'], bias=params['pred1_b'], bn=params['pred_bn'],
               stride=1, padding=1, relu=True)
    x = conv2d(x, params['pred2_w'], bias=params['pred2_b'], relu=False)

    # final bilinear upsample to the original input resolution
    x = bilinear_upsample(x, orig_h, orig_w, out_dtype=jnp.float32)
    return jnp.transpose(x, (0, 3, 1, 2))                          # NHWC -> NCHW


# ---------------------------------- main ---------------------------------------
if __name__ == "__main__":
    key = jax.random.PRNGKey(0)
    k_in, k_par = jax.random.split(key)

    # sanity check 1: fused matmul kernel vs reference (bf16 inputs, f32 accumulation)
    a = jax.random.normal(jax.random.PRNGKey(1), (37, 19), jnp.float32)
    b = jax.random.normal(jax.random.PRNGKey(2), (19, 11), jnp.float32)
    sc = jax.random.normal(jax.random.PRNGKey(3), (11,), jnp.float32)
    sh = jax.random.normal(jax.random.PRNGKey(4), (11,), jnp.float32)
    got = matmul_scale_shift(a, b, sc, sh, relu=True, out_dtype=jnp.float32)
    ab = a.astype(jnp.bfloat16).astype(jnp.float32)
    bb = b.astype(jnp.bfloat16).astype(jnp.float32)
    ref = jnp.maximum(jnp.dot(ab, bb, precision=jax.lax.Precision.HIGHEST) * sc + sh, 0.0)
    assert np.allclose(np.asarray(got), np.asarray(ref), atol=1e-2, rtol=1e-2), \
        "matmul kernel mismatch"

    # sanity check 2: tap-accumulated dilated 3x3 conv vs lax.conv_general_dilated
    xc = jax.random.normal(jax.random.PRNGKey(5), (2, 7, 9, 16), jnp.float32)
    wc = _he(jax.random.PRNGKey(6), (3, 3, 16, 32))
    got_c = conv3x3_s1(xc, wc, dilation=2, relu=False, out_dtype=jnp.float32)
    xcb = xc.astype(jnp.bfloat16).astype(jnp.float32)
    wcb = wc.astype(jnp.bfloat16).astype(jnp.float32)
    ref_c = jax.lax.conv_general_dilated(
        xcb, wcb, window_strides=(1, 1), padding=[(2, 2), (2, 2)],
        rhs_dilation=(2, 2), dimension_numbers=('NHWC', 'HWIO', 'NHWC'),
        precision=jax.lax.Precision.HIGHEST)
    assert np.allclose(np.asarray(got_c), np.asarray(ref_c), atol=1e-2, rtol=1e-2), \
        "conv3x3 tap kernel mismatch"

    # full PSPNet forward: N=2, 3 channels, 64x64 spatial
    x = jax.random.normal(k_in, (2, 3, 64, 64), jnp.float32)
    params = init_params(k_par)
    forward = jax.jit(lambda inp: pspnet_forward(params, inp))
    out = jax.block_until_ready(forward(x))

    assert out.shape == (2, N_CLASS, 64, 64), out.shape
    assert bool(jnp.all(jnp.isfinite(out)))
    print("KERNEL_OK")
</pallas_src>

<mosaic_0001>
module attributes {stable_mosaic.version = 11 : i64} {
  func.func @_matmul_kernel(%arg0: i32, %arg1: memref<40x19xbf16, #tpu.memory_space<vmem>>, %arg2: memref<19x11xbf16, #tpu.memory_space<vmem>>, %arg3: memref<1x11xf32, #tpu.memory_space<vmem>>, %arg4: memref<1x11xf32, #tpu.memory_space<vmem>>, %arg5: memref<40x11xf32, #tpu.memory_space<vmem>>) attributes {dimension_semantics = [#tpu.dimension_semantics<parallel>], iteration_bounds = array<i64: 1>, scalar_prefetch = 0 : i64, scratch_operands = 0 : i64, tpu.core_type = #tpu.core_type<tc>, window_params = [{transform_indices = @transform_0, window_bounds = array<i64: 40, 19>}, {pipeline_mode = #tpu.pipeline_mode<synchronous>, transform_indices = @transform_1, window_bounds = array<i64: 19, 11>}, {pipeline_mode = #tpu.pipeline_mode<synchronous>, transform_indices = @transform_2, window_bounds = array<i64: 1, 11>}, {pipeline_mode = #tpu.pipeline_mode<synchronous>, transform_indices = @transform_3, window_bounds = array<i64: 1, 11>}, {transform_indices = @transform_4, window_bounds = array<i64: 40, 11>}]} {
    %c0 = arith.constant 0 : index
    %c0_0 = arith.constant 0 : index
    %0 = vector.load %arg1[%c0, %c0_0] : memref<40x19xbf16, #tpu.memory_space<vmem>>, vector<40x19xbf16>
    %c0_1 = arith.constant 0 : index
    %c0_2 = arith.constant 0 : index
    %1 = vector.load %arg2[%c0_1, %c0_2] : memref<19x11xbf16, #tpu.memory_space<vmem>>, vector<19x11xbf16>
    %cst = arith.constant dense<0.000000e+00> : vector<40x11xf32>
    %2 = tpu.matmul %0, %1, %cst {dimension_numbers = #tpu.dot_dimension_numbers<[1], [0], [0], [1], [0, 0, 1, 1], [], []>} : vector<40x19xbf16>, vector<19x11xbf16>, vector<40x11xf32> -> vector<40x11xf32>
    %c0_3 = arith.constant 0 : index
    %c0_4 = arith.constant 0 : index
    %3 = vector.load %arg3[%c0_3, %c0_4] : memref<1x11xf32, #tpu.memory_space<vmem>>, vector<1x11xf32>
    %4 = vector.broadcast %3 : vector<1x11xf32> to vector<40x11xf32>
    %5 = arith.mulf %2, %4 : vector<40x11xf32>
    %c0_5 = arith.constant 0 : index
    %c0_6 = arith.constant 0 : index
    %6 = vector.load %arg4[%c0_5, %c0_6] : memref<1x11xf32, #tpu.memory_space<vmem>>, vector<1x11xf32>
    %7 = vector.broadcast %6 : vector<1x11xf32> to vector<40x11xf32>
    %8 = arith.addf %5, %7 : vector<40x11xf32>
    %cst_7 = arith.constant 0.000000e+00 : f32
    %9 = vector.broadcast %cst_7 : f32 to vector<40x11xf32>
    %10 = arith.maximumf %8, %9 : vector<40x11xf32>
    %c0_8 = arith.constant 0 : index
    %c0_9 = arith.constant 0 : index
    %11 = vector.load %arg5[%c0_8, %c0_9] : memref<40x11xf32, #tpu.memory_space<vmem>>, vector<40x11xf32>
    tpu.vector_store %arg5[%c0_8, %c0_9], %10 {strides = array<i32>} : memref<40x11xf32, #tpu.memory_space<vmem>>, vector<40x11xf32>,
    return
  }
  func.func @transform_0(%arg0: i32) -> (i32, i32) {
    %c0_i32 = arith.constant 0 : i32
    %c0_i32_0 = arith.constant 0 : i32
    return %arg0, %c0_i32 : i32, i32
  }
  func.func @transform_1(%arg0: i32) -> (i32, i32) {
    %c0_i32 = arith.constant 0 : i32
    %c0_i32_0 = arith.constant 0 : i32
    %c0_i32_1 = arith.constant 0 : i32
    return %c0_i32, %c0_i32_0 : i32, i32
  }
  func.func @transform_2(%arg0: i32) -> (i32, i32) {
    %c0_i32 = arith.constant 0 : i32
    %c0_i32_0 = arith.constant 0 : i32
    %c0_i32_1 = arith.constant 0 : i32
    return %c0_i32, %c0_i32_0 : i32, i32
  }
  func.func @transform_3(%arg0: i32) -> (i32, i32) {
    %c0_i32 = arith.constant 0 : i32
    %c0_i32_0 = arith.constant 0 : i32
    %c0_i32_1 = arith.constant 0 : i32
    return %c0_i32, %c0_i32_0 : i32, i32
  }
  func.func @transform_4(%arg0: i32) -> (i32, i32) {
    %c0_i32 = arith.constant 0 : i32
    %c0_i32_0 = arith.constant 0 : i32
    return %arg0, %c0_i32 : i32, i32
  }
}

</mosaic_0001>

<llo_original>
// kernel: tpu_custom_call.1
$region0: #{tpu_custom_call.1}
  #allocation0 [shape = 'u32[]', space=smem, size = 0x4, offset = 0x4, fixed_abs, tag = 'smem constant byte address 0x4 - core index']
  #allocation1 [shape = 'u32[144,128]{1,0:T(1,128)}', space=vmem, size = 0x12000, scoped, tag = 'internal scratch']
  %s0 = inlined_call_operand.vmem [shape: bf16[37,19], index: 0, kind: input, shape index: {}]
  %s1 = inlined_call_operand.vmem [shape: bf16[19,11], index: 1, kind: input, shape index: {}]
  %s2 = inlined_call_operand.vmem [shape: f32[1,11], index: 2, kind: input, shape index: {}]
  %s3 = inlined_call_operand.vmem [shape: f32[1,11], index: 3, kind: input, shape index: {}]
  %s4 = inlined_call_operand.vmem [shape: f32[37,11], index: 4, kind: output, shape index: {}]
  %s5 = sld [smem:[#allocation0]]
  $region26: #{tpu_custom_call.1} parent=0
    _
  %s7 = ssub.s32 1, %s5
  %s8 = scalar_select 0, %s7, %s5
  // Predicated region
  $region2: #{tpu_custom_call.1} parent=0 // pred_check
    _
  $region3: #{tpu_custom_call.1} parent=0 // pred_check_branch
    %10 = sbr.rel (0) target = $region5
  $region4: #{tpu_custom_call.1} parent=0 // pred_region
    _
  $region5: #{tpu_custom_call.1} parent=0 // pred_fallthru
    _
  // Predicated region
  $region6: #{tpu_custom_call.1} parent=0 // pred_check
    _
  $region7: #{tpu_custom_call.1} parent=0 // pred_check_branch
    %12 = sbr.rel (0) target = $region9
  $region8: #{tpu_custom_call.1} parent=0 // pred_region
    _
  $region9: #{tpu_custom_call.1} parent=0 // pred_fallthru
    _
  // Predicated region
  $region10: #{tpu_custom_call.1} parent=0 // pred_check
    _
  $region11: #{tpu_custom_call.1} parent=0 // pred_check_branch
    %14 = sbr.rel (0) target = $region13
  $region12: #{tpu_custom_call.1} parent=0 // pred_region
    _
  $region13: #{tpu_custom_call.1} parent=0 // pred_fallthru
    _
  // Predicated region
  $region14: #{tpu_custom_call.1} parent=0 // pred_check
    _
  $region15: #{tpu_custom_call.1} parent=0 // pred_check_branch
    %16 = sbr.rel (0) target = $region17
  $region16: #{tpu_custom_call.1} parent=0 // pred_region
    _
  $region17: #{tpu_custom_call.1} parent=0 // pred_fallthru
    _
  %v18 = vld [vmem:[%s0] sm:$0xf]
  %v19 = vld [vmem:[%s0 + $0x4] sm:$0xf]
  %v20 = vld [vmem:[%s0 + $0x8] sm:$0xf]
  %v21 = vld [vmem:[%s0 + $0xc] sm:$0xf]
  %v22 = vld [vmem:[%s0 + $0x10] sm:$0xf]
  %v23 = vld [vmem:[%s1] sm:$0xf]
  %v24 = vld [vmem:[%s1 + $0x4] sm:$0xf]
  %v25 = vld [vmem:[%s1 + $0x8] sm:$0x3]
  %v31 = vunpack.c.l.b16 %v18
  %v32 = vunpack.c.l.b16 %v19
  %v33 = vunpack.c.l.b16 %v20
  %v34 = vunpack.c.l.b16 %v21
  %v35 = vunpack.c.l.b16 %v22
  %v36 = vpack.c.b16 %v32, %v31
  %v37 = vpack.c.b16 %v34, %v33
  %v38 = vpack.c.b16 %v35, %v35
  %v42 = vunpack.c.l.b16 %v23
  %v43 = vunpack.c.l.b16 %v24
  %v44 = vunpack.c.l.b16 %v25
  %v45 = vpack.c.b16 %v43, %v42
  %v46 = vpack.c.b16 %v44, %v44
  %vm48 = vcmask 154624
  %v50 = vsel %vm48, %v36, 0
  %v53 = vsel %vm48, %v37, 0
  %v56 = vsel %vm48, %v38, 0
  %vm58 = vcmask 1040384
  %vm59 = vcmask 1041408
  %v60 = vsel %vm58, 4294967295, 65535
  %v61 = vsel %vm59, %v60, 0
  %v63 = vand.u32 %v46, %v61
  %65 = vmatprep.subr.bf16.mxu0 0
  %66 = vmatpush1.bf16.msra.mxu0 %v45
  %67 = vmatprep.subr.bf16.mxu0 0
  %68 = vmatpush1.bf16.msra.mxu0 %v63
  %69 = vmatprep.subr.bf16.mxu0 0
  %70 = vmatpush1.bf16.msra.mxu0 0
  %71 = vmatprep.subr.bf16.mxu0 0
  %72 = vmatpush1.bf16.msra.mxu0 0
  %73 = vmatprep.subr.bf16.mxu0 0
  %74 = vmatpush1.bf16.msra.mxu0 0
  %75 = vmatprep.subr.bf16.mxu0 0
  %76 = vmatpush1.bf16.msra.mxu0 0
  %77 = vmatprep.subr.bf16.mxu0 0
  %78 = vmatpush1.bf16.msra.mxu0 0
  %79 = vmatprep.subr.bf16.mxu0 0
  %80 = vmatpush1.bf16.msra.mxu0 0
  %81 = vmatprep.subr.bf16.mxu0 0
  %82 = vmatpush1.bf16.msra.mxu0 0
  %83 = vmatprep.subr.bf16.mxu0 0
  %84 = vmatpush1.bf16.msra.mxu0 0
  %85 = vmatprep.subr.bf16.mxu0 0
  %86 = vmatpush1.bf16.msra.mxu0 0
  %87 = vmatprep.subr.bf16.mxu0 0
  %88 = vmatpush1.bf16.msra.mxu0 0
  %89 = vmatprep.subr.bf16.mxu0 0
  %90 = vmatpush1.bf16.msra.mxu0 0
  %91 = vmatprep.subr.bf16.mxu0 0
  %92 = vmatpush1.bf16.msra.mxu0 0
  %93 = vmatprep.subr.bf16.mxu0 0
  %94 = vmatpush1.bf16.msra.mxu0 0
  %95 = vmatprep.subr.bf16.mxu0 0
  %96 = vmatpush1.bf16.msra.mxu0 0
  %97 = vmatprep.mubr.bf16.mxu0 0
  %98 = vmatmul.mubr.bf16.gmra.mrb[0].mxu0 %v50
  %v99 = vpop.f32.mrb[0].mxu0
  %v100 = vadd.f32 0.0, %v99
  %v101 = vpop.f32.mrb[0].mxu0
  %v102 = vpop.f32.mrb[0].mxu0
  %v103 = vadd.f32 0.0, %v102
  %v104 = vpop.f32.mrb[0].mxu0
  %105 = vmatprep.mubr.bf16.mxu0 0
  %106 = vmatmul.mubr.bf16.gmra.mrb[0].mxu0 %v53
  %v107 = vpop.f32.mrb[0].mxu0
  %v108 = vadd.f32 0.0, %v107
  %v109 = vpop.f32.mrb[0].mxu0
  %v110 = vpop.f32.mrb[0].mxu0
  %v111 = vadd.f32 0.0, %v110
  %v112 = vpop.f32.mrb[0].mxu0
  %113 = vmatprep.mubr.bf16.mxu0 0
  %114 = vmatmul.mubr.bf16.gmra.mrb[0].mxu0 %v56
  %v115 = vpop.f32.mrb[0].mxu0
  %v116 = vadd.f32 0.0, %v115
  %v117 = vpop.f32.mrb[0].mxu0
  %v118 = vpop.f32.mrb[0].mxu0
  %v119 = vpop.f32.mrb[0].mxu0
  %120 = vdwg.mxu0
  %v121 = vld [vmem:[%s2] sm:$0x1]
  %v123 = vlaneseq
  %v124 = vshrl.u32 %v123, 7
  %v125 = vsub.s32 0, %v124
  %v126 = vrot.slane %v121, %v125
  %v128 = vmul.f32 %v100, %v126
  %v129 = vmul.f32 %v103, %v126
  %v130 = vmul.f32 %v108, %v126
  %v131 = vmul.f32 %v111, %v126
  %v132 = vmul.f32 %v116, %v126
  %v133 = vld [vmem:[%s3] sm:$0x1]
  %v135 = vlaneseq
  %v136 = vshrl.u32 %v135, 7
  %v137 = vsub.s32 0, %v136
  %v138 = vrot.slane %v133, %v137
  %v140 = vadd.f32 %v128, %v138
  %v141 = vadd.f32 %v129, %v138
  %v142 = vadd.f32 %v130, %v138
  %v143 = vadd.f32 %v131, %v138
  %v144 = vadd.f32 %v132, %v138
  %v145 = vmax.f32 %v140, 0.0
  %v146 = vmax.f32 %v141, 0.0
  %v147 = vmax.f32 %v142, 0.0
  %v148 = vmax.f32 %v143, 0.0
  %v149 = vmax.f32 %v144, 0.0
  %vm150 = vcmask 89088
  %151 = vst.msk [vmem:[%s4] sm:$0xff] %vm150, %v145
  %152 = vst.msk [vmem:[%s4 + $0x8] sm:$0xff] %vm150, %v146
  %153 = vst.msk [vmem:[%s4 + $0x10] sm:$0xff] %vm150, %v147
  %154 = vst.msk [vmem:[%s4 + $0x18] sm:$0xff] %vm150, %v148
  %155 = vst.msk [vmem:[%s4 + $0x20] sm:$0xff] %vm150, %v149
  // Predicated region
  $region18: #{tpu_custom_call.1} parent=0 // pred_check
    _
  $region19: #{tpu_custom_call.1} parent=0 // pred_check_branch
    %157 = sbr.rel (0) target = $region21
  $region20: #{tpu_custom_call.1} parent=0 // pred_region
    _
  $region21: #{tpu_custom_call.1} parent=0 // pred_fallthru
    _
  // Predicated region
  $region22: #{tpu_custom_call.1} parent=0 // pred_check
    _
  $region23: #{tpu_custom_call.1} parent=0 // pred_check_branch
    %159 = sbr.rel (0) target = $region25
  $region24: #{tpu_custom_call.1} parent=0 // pred_region
    _
  $region25: #{tpu_custom_call.1} parent=0 // pred_fallthru
    _

</llo_original>
